<compile_context>
chip_gen: v6e
topology: v6e:2x2x1
jax: 0.10.0
libtpu: 0.0.40
codegen_flags: <defaults>
</compile_context>

<pallas_src>
import jax
import jax.numpy as jnp
from jax.experimental import pallas as pl
from jax.experimental.pallas import tpu as pltpu


def _reward_mlp_kernel(x_ref, w1_ref, aux_ref, o_ref):
    # Layer 1: one MXU pass, f32 accumulate, bias-add + ReLU on the VPU.
    x = x_ref[...]                                            # [B, D]
    h = jnp.dot(x, w1_ref[...],
                preferred_element_type=jnp.float32)           # [B, H]
    h = jnp.maximum(h + aux_ref[0:1, :], 0.0)                 # + b1, ReLU

    # Layer 2 (output dim 1): VPU multiply + cross-lane reduce (XLU slot).
    y = jnp.sum(h * aux_ref[1:2, :], axis=-1, keepdims=True)  # [B, 1]
    y = y + aux_ref[2:3, 0:1]                                 # + b2

    # Direct [B, 1] store -- one tiny masked vst, no slab / wrapper slice.
    o_ref[...] = y.astype(o_ref.dtype)


def _pack_aux(b1, w2, b2, H):
    """Pack layer-1 bias, layer-2 weight row and layer-2 bias into [3, H]."""
    return jnp.concatenate(
        [
            b1.reshape(1, H).astype(jnp.float32),
            w2.reshape(H, 1).T.astype(jnp.float32),            # [1, H]
            jnp.broadcast_to(b2.reshape(1, 1).astype(jnp.float32), (1, H)),
        ],
        axis=0,
    )


def reward_network_forward(x, w1, b1, w2, b2, *, batch_tile=256):
    """x: [B, D] f32. Returns [B, 1] f32 expected immediate reward.

    Weights use the already-transposed convention: w1 [D, H], w2 [H, 1],
    b1 broadcastable to [1, H], b2 a scalar (any shape that reshapes to (1,1)).
    """
    B, D = x.shape
    H = w1.shape[1]
    aux = _pack_aux(b1, w2, b2, H)   # [3, H]; with jit this is hoisted/constant

    cost = pl.CostEstimate(
        flops=2 * B * D * H + 2 * B * H,
        bytes_accessed=(B * D + D * H + 3 * H + B) * 4,
        transcendentals=0,
    )

    if B > batch_tile and B % batch_tile == 0:
        # Batched-inference path: parallel batch grid (megacore-shardable on
        # v7x), constant index_maps keep the weights VMEM-resident per step.
        grid = (B // batch_tile,)
        return pl.pallas_call(
            _reward_mlp_kernel,
            out_shape=jax.ShapeDtypeStruct((B, 1), jnp.float32),
            grid_spec=pltpu.PrefetchScalarGridSpec(
                num_scalar_prefetch=0,
                grid=grid,
                in_specs=[
                    pl.BlockSpec((batch_tile, D), lambda i: (i, 0)),  # x tile
                    pl.BlockSpec((D, H), lambda i: (0, 0)),           # w1
                    pl.BlockSpec((3, H), lambda i: (0, 0)),           # aux
                ],
                out_specs=pl.BlockSpec((batch_tile, 1), lambda i: (i, 0)),
            ),
            compiler_params=pltpu.CompilerParams(
                dimension_semantics=("parallel",)),
            cost_estimate=cost,
        )(x, w1, aux)

    # Micro-batch path (typical MCTS step): single ungridded invocation, no
    # pipeline bookkeeping, 3 operands, direct [B, 1] output.
    return pl.pallas_call(
        _reward_mlp_kernel,
        out_shape=jax.ShapeDtypeStruct((B, 1), jnp.float32),
        in_specs=[
            pl.BlockSpec(memory_space=pltpu.MemorySpace.VMEM),  # x
            pl.BlockSpec(memory_space=pltpu.MemorySpace.VMEM),  # w1
            pl.BlockSpec(memory_space=pltpu.MemorySpace.VMEM),  # aux
        ],
        out_specs=pl.BlockSpec(memory_space=pltpu.MemorySpace.VMEM),
        cost_estimate=cost,
    )(x, w1, aux)


if __name__ == "__main__":
    # Shapes implied by the module: input_size = latent_dim (+ action enc),
    # hidden_neurons, scalar reward output. Small deterministic example.
    B = 8            # batch (sublane-aligned)
    INPUT_SIZE = 32  # latent state + action encoding size
    HIDDEN = 32      # hidden_neurons

    key = jax.random.PRNGKey(0)
    kx, k1, kb1, k2, kb2, kbig = jax.random.split(key, 6)

    x = jax.random.normal(kx, (B, INPUT_SIZE), dtype=jnp.float32)

    # Deterministic init mimicking nn.Linear default (uniform(-1/sqrt(fan_in), ...)).
    lim1 = 1.0 / jnp.sqrt(jnp.float32(INPUT_SIZE))
    w1 = jax.random.uniform(k1, (INPUT_SIZE, HIDDEN), jnp.float32, -lim1, lim1)
    b1 = jax.random.uniform(kb1, (1, HIDDEN), jnp.float32, -lim1, lim1)
    lim2 = 1.0 / jnp.sqrt(jnp.float32(HIDDEN))
    w2 = jax.random.uniform(k2, (HIDDEN, 1), jnp.float32, -lim2, lim2)
    b2 = jax.random.uniform(kb2, (1, 1), jnp.float32, -lim2, lim2)

    def ref_fn(xin):
        return jnp.maximum(xin @ w1 + b1, 0.0) @ w2 + b2

    # --- micro-batch path (single ungridded call) ---
    out = jax.block_until_ready(reward_network_forward(x, w1, b1, w2, b2))
    assert out.shape == (B, 1)
    assert jnp.allclose(out, ref_fn(x), atol=1e-5, rtol=1e-5)

    # --- batched-inference path (parallel batch grid, 2 steps of 256 rows) ---
    BIG = 512
    x_big = jax.random.normal(kbig, (BIG, INPUT_SIZE), dtype=jnp.float32)
    out_big = jax.block_until_ready(
        reward_network_forward(x_big, w1, b1, w2, b2, batch_tile=256))
    assert out_big.shape == (BIG, 1)
    assert jnp.allclose(out_big, ref_fn(x_big), atol=1e-5, rtol=1e-5)

    print("KERNEL_OK")
</pallas_src>

<mosaic_0001>
module attributes {stable_mosaic.version = 11 : i64} {
  func.func @_reward_mlp_kernel(%arg0: memref<8x32xf32, #tpu.memory_space<vmem>>, %arg1: memref<32x32xf32, #tpu.memory_space<vmem>>, %arg2: memref<3x32xf32, #tpu.memory_space<vmem>>, %arg3: memref<8x1xf32, #tpu.memory_space<vmem>>) attributes {dimension_semantics = [], scalar_prefetch = 0 : i64, scratch_operands = 0 : i64, tpu.core_type = #tpu.core_type<tc>} {
    %c0 = arith.constant 0 : index
    %c0_0 = arith.constant 0 : index
    %0 = vector.load %arg0[%c0, %c0_0] : memref<8x32xf32, #tpu.memory_space<vmem>>, vector<8x32xf32>
    %c0_1 = arith.constant 0 : index
    %c0_2 = arith.constant 0 : index
    %1 = vector.load %arg1[%c0_1, %c0_2] : memref<32x32xf32, #tpu.memory_space<vmem>>, vector<32x32xf32>
    %cst = arith.constant dense<0.000000e+00> : vector<8x32xf32>
    %2 = tpu.matmul %0, %1, %cst {dimension_numbers = #tpu.dot_dimension_numbers<[1], [0], [0], [1], [0, 0, 1, 1], [], []>} : vector<8x32xf32>, vector<32x32xf32>, vector<8x32xf32> -> vector<8x32xf32>
    %c0_3 = arith.constant 0 : index
    %c0_4 = arith.constant 0 : index
    %3 = vector.load %arg2[%c0_3, %c0_4] : memref<3x32xf32, #tpu.memory_space<vmem>>, vector<1x32xf32>
    %4 = vector.broadcast %3 : vector<1x32xf32> to vector<8x32xf32>
    %5 = arith.addf %2, %4 : vector<8x32xf32>
    %cst_5 = arith.constant 0.000000e+00 : f32
    %6 = vector.broadcast %cst_5 : f32 to vector<8x32xf32>
    %7 = arith.maximumf %5, %6 : vector<8x32xf32>
    %c1 = arith.constant 1 : index
    %c0_6 = arith.constant 0 : index
    %8 = vector.load %arg2[%c1, %c0_6] : memref<3x32xf32, #tpu.memory_space<vmem>>, vector<1x32xf32>
    %9 = vector.broadcast %8 : vector<1x32xf32> to vector<8x32xf32>
    %10 = arith.mulf %7, %9 : vector<8x32xf32>
    %cst_7 = arith.constant dense<0.000000e+00> : vector<8xf32>
    %11 = vector.multi_reduction <add>, %10, %cst_7 [1] : vector<8x32xf32> to vector<8xf32>
    %12 = vector.shape_cast %11 : vector<8xf32> to vector<8x1xf32>
    %c2 = arith.constant 2 : index
    %c0_8 = arith.constant 0 : index
    %13 = vector.load %arg2[%c2, %c0_8] : memref<3x32xf32, #tpu.memory_space<vmem>>, vector<1x1xf32>
    %14 = vector.broadcast %13 : vector<1x1xf32> to vector<8x1xf32>
    %15 = arith.addf %12, %14 : vector<8x1xf32>
    %c0_9 = arith.constant 0 : index
    %c0_10 = arith.constant 0 : index
    %16 = vector.load %arg3[%c0_9, %c0_10] : memref<8x1xf32, #tpu.memory_space<vmem>>, vector<8x1xf32>
    tpu.vector_store %arg3[%c0_9, %c0_10], %15 {strides = array<i32>} : memref<8x1xf32, #tpu.memory_space<vmem>>, vector<8x1xf32>,
    return
  }
}

</mosaic_0001>

<llo_original>
// kernel: tpu_custom_call.1
$region0: #{tpu_custom_call.1}
  #allocation0 [shape = 'u32[]', space=smem, size = 0x4, offset = 0x4, fixed_abs, tag = 'smem constant byte address 0x4 - core index']
  #allocation1 [shape = 'u32[144,128]{1,0:T(1,128)}', space=vmem, size = 0x12000, scoped, tag = 'internal scratch']
  %s0 = inlined_call_operand.hbm [shape: f32[8,32], index: 0, kind: input, shape index: {}]
  %s1 = inlined_call_operand.hbm [shape: f32[32,32], index: 1, kind: input, shape index: {}]
  %s2 = inlined_call_operand.hbm [shape: f32[3,32], index: 2, kind: input, shape index: {}]
  %s3 = inlined_call_operand.vmem [shape: f32[8,1], index: 3, kind: output, shape index: {}]
  %s4 = sld [smem:[#allocation0]]
  $region34: #{tpu_custom_call.1} parent=0
    _
  %s6 = ssub.s32 1, %s4
  %s7 = scalar_select 0, %s6, %s4
  $region1: #{tpu_custom_call.1} parent=0
    #allocation2 [shape = 'u8[4096]{0}', space=vmem, size = 0x1000, scoped, tag = 'input window, operand 0, single buffered']
    #allocation3 [shape = 's32[1]{0}', space=sflag, size = 0x4, scoped, tag = 'scoped memory for tpu_custom_call.1']
    #allocation4 [shape = 'u8[16384]{0}', space=vmem, size = 0x4000, scoped, tag = 'input window, operand 1, single buffered']
    #allocation5 [shape = 's32[1]{0}', space=sflag, size = 0x4, scoped, tag = 'scoped memory for tpu_custom_call.1']
    #allocation6 [shape = 'u8[2048]{0}', space=vmem, size = 0x800, scoped, tag = 'input window, operand 2, single buffered']
    %8 = vsyncpa [#allocation3], 0
    %9 = vsyncpa [#allocation5], 0
    // Predicated region
    $region2: #{tpu_custom_call.1} parent=1 // pred_check
      _
    $region3: #{tpu_custom_call.1} parent=1 // pred_check_branch
      %11 = sbr.rel (0) target = $region5
    $region4: #{tpu_custom_call.1} parent=1 // pred_region
      %s13 = ssub.s32 128, 128
      %14 = vsyncadd [#allocation3], %s13
      %s16 = sshll.u32 [#allocation2], 4
      %s17 = int_to_ptr.vmem [resolvable:$true] %s16
      %19 = dma.hbm_to_vmem [thread:$0]  %s0, 128, %s17, [#allocation3]
    $region5: #{tpu_custom_call.1} parent=1 // pred_fallthru
      _
    // Predicated region
    $region6: #{tpu_custom_call.1} parent=1 // pred_check
      _
    $region7: #{tpu_custom_call.1} parent=1 // pred_check_branch
      %21 = sbr.rel (0) target = $region9
    $region8: #{tpu_custom_call.1} parent=1 // pred_region
      %s23 = ssub.s32 512, 512
      %24 = vsyncadd [#allocation5], %s23
      %s25 = sshll.u32 [#allocation4], 4
      %s26 = int_to_ptr.vmem [resolvable:$true] %s25
      %31 = dma.hbm_to_vmem [thread:$0]  %s1, 512, %s26, [#allocation5], 128, 128, 8
    $region9: #{tpu_custom_call.1} parent=1 // pred_fallthru
      _
    // Predicated region
    $region10: #{tpu_custom_call.1} parent=1 // pred_check
      _
    $region11: #{tpu_custom_call.1} parent=1 // pred_check_branch
      %33 = sbr.rel (0) target = $region13
    $region12: #{tpu_custom_call.1} parent=1 // pred_region
      %s35 = ssub.s32 64, 64
      %36 = vsyncadd [#allocation5], %s35
      %s38 = sshll.u32 [#allocation6], 4
      %s39 = int_to_ptr.vmem [resolvable:$true] %s38
      %41 = dma.hbm_to_vmem [thread:$0]  %s2, 64, %s39, [#allocation5]
    $region13: #{tpu_custom_call.1} parent=1 // pred_fallthru
      _
    // Predicated region
    $region14: #{tpu_custom_call.1} parent=1 // pred_check
      _
    $region15: #{tpu_custom_call.1} parent=1 // pred_check_branch
      %43 = sbr.rel (0) target = $region17
    $region16: #{tpu_custom_call.1} parent=1 // pred_region
      %44 = dma.done [#allocation3], 128
    $region17: #{tpu_custom_call.1} parent=1 // pred_fallthru
      _
    // Predicated region
    $region18: #{tpu_custom_call.1} parent=1 // pred_check
      _
    $region19: #{tpu_custom_call.1} parent=1 // pred_check_branch
      %46 = sbr.rel (0) target = $region21
    $region20: #{tpu_custom_call.1} parent=1 // pred_region
      %47 = dma.done [#allocation5], 512
    $region21: #{tpu_custom_call.1} parent=1 // pred_fallthru
      _
    // Predicated region
    $region22: #{tpu_custom_call.1} parent=1 // pred_check
      _
    $region23: #{tpu_custom_call.1} parent=1 // pred_check_branch
      %49 = sbr.rel (0) target = $region25
    $region24: #{tpu_custom_call.1} parent=1 // pred_region
      %50 = dma.done [#allocation5], 64
    $region25: #{tpu_custom_call.1} parent=1 // pred_fallthru
      _
    %v51 = vld [vmem:[#allocation2] sm:$0xff]
    %v52 = vld [vmem:[#allocation4] sm:$0xff]
    %v53 = vld [vmem:[#allocation4 + $0x8] sm:$0xff]
    %v54 = vld [vmem:[#allocation4 + $0x10] sm:$0xff]
    %v55 = vld [vmem:[#allocation4 + $0x18] sm:$0xff]
    %v56 = vld [vmem:[#allocation6] sm:$0x1]
    %v57 = vlaneseq
    %v58 = vshrl.u32 %v57, 7
    %v59 = vsub.s32 0, %v58
    %v60 = vrot.slane %v56, %v59
    %vm61 = vcmask 261120
    %v63 = vsel %vm61, %v51, 0
    %65 = vmatprep.subr.mxu0 0.0
    %66 = vmatpush1.msra.mxu0 0.0
    %67 = vmatprep.subr.mxu0 0.0
    %68 = vmatpush1.msra.mxu0 0.0
    %69 = vmatprep.subr.mxu0 0.0
    %70 = vmatpush1.msra.mxu0 0.0
    %71 = vmatprep.subr.mxu0 0.0
    %72 = vmatpush1.msra.mxu0 0.0
    %73 = vmatprep.subr.mxu0 0.0
    %74 = vmatpush1.msra.mxu0 0.0
    %75 = vmatprep.subr.mxu0 0.0
    %76 = vmatpush1.msra.mxu0 0.0
    %77 = vmatprep.subr.mxu0 0.0
    %78 = vmatpush1.msra.mxu0 0.0
    %79 = vmatprep.subr.mxu0 0.0
    %80 = vmatpush1.msra.mxu0 0.0
    %81 = vmatprep.subr.mxu0 0.0
    %82 = vmatpush1.msra.mxu0 0.0
    %83 = vmatprep.subr.mxu0 0.0
    %84 = vmatpush1.msra.mxu0 0.0
    %85 = vmatprep.subr.mxu0 0.0
    %86 = vmatpush1.msra.mxu0 0.0
    %87 = vmatprep.subr.mxu0 0.0
    %88 = vmatpush1.msra.mxu0 0.0
    %89 = vmatprep.subr.mxu0 0.0
    %90 = vmatpush1.msra.mxu0 %v55
    %91 = vmatprep.subr.mxu0 0.0
    %92 = vmatpush1.msra.mxu0 %v54
    %93 = vmatprep.subr.mxu0 0.0
    %94 = vmatpush1.msra.mxu0 %v53
    %95 = vmatprep.subr.mxu0 0.0
    %96 = vmatpush1.msra.mxu0 %v52
    %97 = vmatprep.subr.mxu0 0.0
    %98 = vmatpush2.msra.mxu0 0.0
    %99 = vmatprep.subr.mxu0 0.0
    %100 = vmatpush2.msra.mxu0 0.0
    %101 = vmatprep.subr.mxu0 0.0
    %102 = vmatpush2.msra.mxu0 0.0
    %103 = vmatprep.subr.mxu0 0.0
    %104 = vmatpush2.msra.mxu0 0.0
    %105 = vmatprep.subr.mxu0 0.0
    %106 = vmatpush2.msra.mxu0 0.0
    %107 = vmatprep.subr.mxu0 0.0
    %108 = vmatpush2.msra.mxu0 0.0
    %109 = vmatprep.subr.mxu0 0.0
    %110 = vmatpush2.msra.mxu0 0.0
    %111 = vmatprep.subr.mxu0 0.0
    %112 = vmatpush2.msra.mxu0 0.0
    %113 = vmatprep.subr.mxu0 0.0
    %114 = vmatpush2.msra.mxu0 0.0
    %115 = vmatprep.subr.mxu0 0.0
    %116 = vmatpush2.msra.mxu0 0.0
    %117 = vmatprep.subr.mxu0 0.0
    %118 = vmatpush2.msra.mxu0 0.0
    %119 = vmatprep.subr.mxu0 0.0
    %120 = vmatpush2.msra.mxu0 0.0
    %121 = vmatprep.subr.mxu0 0.0
    %122 = vmatpush2.msra.mxu0 0.0
    %123 = vmatprep.subr.mxu0 0.0
    %124 = vmatpush2.msra.mxu0 0.0
    %125 = vmatprep.subr.mxu0 0.0
    %126 = vmatpush2.msra.mxu0 0.0
    %127 = vmatprep.subr.mxu0 0.0
    %128 = vmatpush2.msra.mxu0 0.0
    %129 = vmatprep.mubr.f32.mxu0 0.0
    %130 = vmatmul.mubr.f32.gmra.mxu0 %v63
    %v131 = vpop.f32.mrf.mxu0
    %v132 = vadd.f32 %v60, %v131
    %v133 = vpop.f32.mrf.mxu0
    %134 = vdwg.mxu0
    %v135 = vmax.f32 %v132, 0.0
    %v136 = vld [vmem:[#allocation6 + $0x1] sm:$0x1]
    %v137 = vlaneseq
    %v138 = vshrl.u32 %v137, 7
    %v139 = vsub.s32 0, %v138
    %v140 = vrot.slane %v136, %v139
    %v141 = vmul.f32 %v135, %v140
    %v142 = vsel %vm61, %v141, 0.0
    %143 = vadd.xlane.f32.xlu0 %v142
    %v144 = vpop.xlane.xlu0 %143
    %v145 = vld [vmem:[#allocation6 + $0x2] sm:$0x1]
    %v146 = vlaneseq
    %v147 = vshrl.u32 %v146, 7
    %v148 = vsub.s32 0, %v147
    %v149 = vrot.slane %v145, %v148
    %v150 = vadd.f32 %v144, %v149
    %vm151 = vcmask 7168
    %152 = vst.msk [vmem:[%s3] sm:$0xff] %vm151, %v150
    // Predicated region
    $region26: #{tpu_custom_call.1} parent=1 // pred_check
      _
    $region27: #{tpu_custom_call.1} parent=1 // pred_check_branch
      %154 = sbr.rel (0) target = $region29
    $region28: #{tpu_custom_call.1} parent=1 // pred_region
      _
    $region29: #{tpu_custom_call.1} parent=1 // pred_fallthru
      _
    // Predicated region
    $region30: #{tpu_custom_call.1} parent=1 // pred_check
      _
    $region31: #{tpu_custom_call.1} parent=1 // pred_check_branch
      %156 = sbr.rel (0) target = $region33
    $region32: #{tpu_custom_call.1} parent=1 // pred_region
      _
    $region33: #{tpu_custom_call.1} parent=1 // pred_fallthru
      _
    %157 = vsyncpa [#allocation3], 1
    %158 = vsyncpa [#allocation5], 1

</llo_original>
